<compile_context>
chip_gen: v5e
topology: v5e:2x2
jax: 0.10.0
libtpu: 0.0.40
codegen_flags: <defaults>
</compile_context>

<pallas_src>
import math
from functools import partial

import jax
import jax.numpy as jnp
from jax.experimental import pallas as pl
from jax.experimental.pallas import tpu as pltpu


# ----------------------------------------------------------------------------
# helpers
# ----------------------------------------------------------------------------
def _round_up(n, m):
    return ((n + m - 1) // m) * m


def _rmsnorm(x, w, eps=1e-6):
    x = x.astype(jnp.float32)
    ms = jnp.mean(x * x, axis=-1, keepdims=True)
    return x * jax.lax.rsqrt(ms + eps) * w


# ----------------------------------------------------------------------------
# patch-embedding kernel:
#   out = patches_flat @ W_patch + add      (add already holds cls/pos/bias)
# All B images are flattened into one (B*L_pad, K_pad) matmul so the MXU M dim
# is filled and the cls concat is fused away.
# ----------------------------------------------------------------------------
def patch_embed_kernel(p_ref, w_ref, add_ref, o_ref):
    y = jnp.dot(p_ref[...], w_ref[...], preferred_element_type=jnp.float32)
    o_ref[...] = y + add_ref[...]


def patch_embed(p_flat, w, add):
    M, _ = p_flat.shape
    D = w.shape[1]
    return pl.pallas_call(
        patch_embed_kernel,
        out_shape=jax.ShapeDtypeStruct((M, D), jnp.float32),
    )(p_flat, w, add)


# ----------------------------------------------------------------------------
# fused transformer block kernel (one grid step per batch element):
#   x = x + W_o(softmax(Q K^T / sqrt(dh)) V)     (pre-RMSNorm)
#   x = x + SwiGLU(RMSNorm(x))
# Weights are bf16 and VMEM-resident across the batch grid (constant index
# maps -> no re-DMA).  Residual stream stays f32.
# ----------------------------------------------------------------------------
def transformer_block_kernel(x_ref, rms1_ref, wqkv_ref, wo_ref,
                             rms2_ref, w13_ref, w3_ref, o_ref,
                             *, n_heads, seq_len, eps):
    x = x_ref[0]                                    # (Lp, D) f32
    Lp, D = x.shape
    dh = D // n_heads
    inv_scale = 1.0 / math.sqrt(dh)

    # ---- attention branch ----
    h = _rmsnorm(x, rms1_ref[...], eps).astype(jnp.bfloat16)
    qkv = jnp.dot(h, wqkv_ref[...], preferred_element_type=jnp.float32)  # (Lp, 3D)
    q = (qkv[:, :D] * inv_scale).astype(jnp.bfloat16)
    k = qkv[:, D:2 * D].astype(jnp.bfloat16)
    v = qkv[:, 2 * D:].astype(jnp.bfloat16)

    # mask padded key columns (>= seq_len) before softmax
    key_valid = jax.lax.broadcasted_iota(jnp.int32, (Lp, Lp), 1) < seq_len

    head_outs = []
    for hi in range(n_heads):                       # static unrolled head loop
        sl = slice(hi * dh, (hi + 1) * dh)
        s = jax.lax.dot_general(q[:, sl], k[:, sl], (((1,), (1,)), ((), ())),
                                preferred_element_type=jnp.float32)      # (Lp, Lp)
        s = jnp.where(key_valid, s, -1e30)
        s = s - jnp.max(s, axis=-1, keepdims=True)
        e = jnp.exp(s)
        p = e * pl.reciprocal(jnp.sum(e, axis=-1, keepdims=True), approx=True)
        head_outs.append(jnp.dot(p.astype(jnp.bfloat16), v[:, sl],
                                 preferred_element_type=jnp.float32))    # (Lp, dh)
    # single fused output projection: concat heads -> one (Lp,D)@(D,D) matmul
    ctx = jnp.concatenate(head_outs, axis=-1).astype(jnp.bfloat16)       # (Lp, D)
    x = x + jnp.dot(ctx, wo_ref[...], preferred_element_type=jnp.float32)

    # ---- feed-forward branch (SwiGLU) ----
    h2 = _rmsnorm(x, rms2_ref[...], eps).astype(jnp.bfloat16)
    gu = jnp.dot(h2, w13_ref[...], preferred_element_type=jnp.float32)   # (Lp, 2*Hd)
    Hd = gu.shape[-1] // 2
    g = gu[:, :Hd]
    u = gu[:, Hd:]
    act = (g * pl.reciprocal(1.0 + jnp.exp(-g), approx=True) * u).astype(jnp.bfloat16)
    x = x + jnp.dot(act, w3_ref[...], preferred_element_type=jnp.float32)

    o_ref[0] = x


def transformer_block(x, lp, n_heads, seq_len, eps=1e-6):
    B, Lp, D = x.shape
    Hd2 = lp["w13"].shape[1]
    kern = partial(transformer_block_kernel, n_heads=n_heads,
                   seq_len=seq_len, eps=eps)
    return pl.pallas_call(
        kern,
        out_shape=jax.ShapeDtypeStruct((B, Lp, D), jnp.float32),
        grid=(B,),
        in_specs=[
            pl.BlockSpec((1, Lp, D), lambda b: (b, 0, 0)),
            pl.BlockSpec((1, D), lambda b: (0, 0)),
            pl.BlockSpec((D, 3 * D), lambda b: (0, 0)),
            pl.BlockSpec((D, D), lambda b: (0, 0)),
            pl.BlockSpec((1, D), lambda b: (0, 0)),
            pl.BlockSpec((D, Hd2), lambda b: (0, 0)),
            pl.BlockSpec((Hd2 // 2, D), lambda b: (0, 0)),
        ],
        out_specs=pl.BlockSpec((1, Lp, D), lambda b: (b, 0, 0)),
        # TODO(synk): for ViT-B scale on v7x (64 MiB VMEM), tile the FFN over
        # Hd and single-buffer the constant-index weight specs.
        compiler_params=pltpu.CompilerParams(
            dimension_semantics=("parallel",),
            vmem_limit_bytes=48 * 1024 * 1024,
        ),
    )(x, lp["rms1"], lp["wqkv"], lp["wo"], lp["rms2"], lp["w13"], lp["w3"])


# ----------------------------------------------------------------------------
# head kernel: RMSNorm(x_cls) @ W_head + b, with W_head lane-padded to 128
# ----------------------------------------------------------------------------
def head_kernel(x_ref, rms_ref, w_ref, b_ref, o_ref, *, eps):
    h = _rmsnorm(x_ref[...], rms_ref[...], eps).astype(jnp.bfloat16)
    o_ref[...] = jnp.dot(h, w_ref[...],
                         preferred_element_type=jnp.float32) + b_ref[...]


def head(x_cls, rms_w, w_pad, b_pad, eps=1e-6):
    B, _ = x_cls.shape
    N = w_pad.shape[1]
    return pl.pallas_call(
        partial(head_kernel, eps=eps),
        out_shape=jax.ShapeDtypeStruct((B, N), jnp.float32),
    )(x_cls, rms_w, w_pad, b_pad)


# ----------------------------------------------------------------------------
# ViT forward (plain-JAX glue: patch extraction, padding, layer loop)
# ----------------------------------------------------------------------------
def extract_patches(grid, patch_size):
    B, C, H, W = grid.shape
    p = patch_size
    Hout = (H - p) // p + 1
    Wout = (W - p) // p + 1
    g = grid[:, :, :Hout * p, :Wout * p].reshape(B, C, Hout, p, Wout, p)
    # 'b c h w -> b (h w) c' token ordering; patch flattened over (c, kh, kw)
    return g.transpose(0, 2, 4, 1, 3, 5).reshape(B, Hout * Wout, C * p * p)


def vit_forward(grid, params, n_heads, patch_size, eps=1e-6):
    B = grid.shape[0]
    D = params["pos"].shape[-1]
    patches = extract_patches(grid, patch_size)          # (B, P, K) f32
    P, K = patches.shape[1], patches.shape[2]
    L = P + 1                                            # + cls token
    Lp = _round_up(L, 128)                               # lane-dense score tiles
    Kp = _round_up(K, 128)                               # lane-dense contraction

    # pad patches into (B, Lp, Kp); row 0 is the cls slot (zeros here)
    p_pad = jnp.zeros((B, Lp, Kp), jnp.float32)
    p_pad = p_pad.at[:, 1:L, :K].set(patches)
    p_flat = p_pad.reshape(B * Lp, Kp).astype(jnp.bfloat16)

    w_pad = jnp.zeros((Kp, D), jnp.bfloat16).at[:K].set(params["patch_w"])

    # additive slab: row 0 = cls embedding, rows 1..P = pos emb + conv bias
    add = jnp.zeros((Lp, D), jnp.float32)
    add = add.at[0].set(params["cls"][0, 0])
    add = add.at[1:L].set(params["pos"] + params["patch_b"])
    add_tiled = jnp.tile(add, (B, 1))                    # (B*Lp, D)

    x = patch_embed(p_flat, w_pad, add_tiled).reshape(B, Lp, D)

    for lp in params["layers"]:
        x = transformer_block(x, lp, n_heads, seq_len=L, eps=eps)

    # head: RMSNorm + Linear(D, 1); lane-pad the N=1 output to 128
    hw = jnp.zeros((D, 128), jnp.bfloat16).at[:, :1].set(params["head_w"])
    hb = jnp.zeros((1, 128), jnp.float32).at[:, :1].set(params["head_b"])
    out = head(x[:, 0], params["head_rms"], hw, hb, eps=eps)   # (B, 128)
    return out[:, 0]                                     # == .squeeze(-1)


# ----------------------------------------------------------------------------
# pure-JAX reference (f32 math on the same bf16-stored weights)
# ----------------------------------------------------------------------------
def ref_forward(grid, params, n_heads, patch_size, eps=1e-6):
    f32 = lambda a: a.astype(jnp.float32)
    B = grid.shape[0]
    patches = extract_patches(grid, patch_size)
    tok = patches @ f32(params["patch_w"]) + params["patch_b"] + params["pos"]
    D = tok.shape[-1]
    dh = D // n_heads
    x = jnp.concatenate([jnp.broadcast_to(params["cls"], (B, 1, D)), tok], axis=1)
    for lp in params["layers"]:
        wqkv = f32(lp["wqkv"])
        wq, wk, wv = wqkv[:, :D], wqkv[:, D:2 * D], wqkv[:, 2 * D:]
        h = _rmsnorm(x, lp["rms1"], eps)
        q = (h @ wq).reshape(B, -1, n_heads, dh).transpose(0, 2, 1, 3)
        k = (h @ wk).reshape(B, -1, n_heads, dh).transpose(0, 2, 1, 3)
        v = (h @ wv).reshape(B, -1, n_heads, dh).transpose(0, 2, 1, 3)
        s = jnp.einsum("bhld,bhmd->bhlm", q, k) / math.sqrt(dh)
        p = jax.nn.softmax(s, axis=-1)
        a = jnp.einsum("bhlm,bhmd->bhld", p, v).transpose(0, 2, 1, 3).reshape(B, -1, D)
        x = x + a @ f32(lp["wo"])
        w13 = f32(lp["w13"]); Hd = w13.shape[1] // 2
        h2 = _rmsnorm(x, lp["rms2"], eps)
        g = h2 @ w13[:, :Hd]
        u = h2 @ w13[:, Hd:]
        x = x + (g * jax.nn.sigmoid(g) * u) @ f32(lp["w3"])
    hcls = _rmsnorm(x[:, 0], params["head_rms"], eps)
    return (hcls @ f32(params["head_w"]) + params["head_b"])[:, 0]


# ----------------------------------------------------------------------------
# deterministic parameter init (synthetic; shapes follow the module __init__)
# ----------------------------------------------------------------------------
def init_params(key, in_channels, d_model, n_layers, n_cols, n_rows,
                patch_size, d_hidden=None):
    if d_hidden is None:
        d_hidden = 4 * d_model  # TODO(synk): SwiGLU hidden size assumed (class def not provided)
    P = (n_rows // patch_size) * (n_cols // patch_size)
    K = in_channels * patch_size * patch_size
    std = math.sqrt(1.0 / d_model)
    keys = iter(jax.random.split(key, 8 + 8 * n_layers))

    conv_w = jax.random.normal(next(keys), (d_model, in_channels, patch_size, patch_size),
                               jnp.float32) * math.sqrt(1.0 / K)
    conv_b = jax.random.normal(next(keys), (d_model,), jnp.float32) * 0.02

    params = {
        "patch_w": conv_w.reshape(d_model, K).T.astype(jnp.bfloat16),   # (K, D)
        "patch_b": conv_b.reshape(1, d_model),
        "cls": jax.random.normal(next(keys), (1, 1, d_model), jnp.float32) * std,
        "pos": jax.random.normal(next(keys), (P, d_model), jnp.float32) * std,
        "head_rms": jnp.ones((1, d_model), jnp.float32),
        "head_w": (jax.random.normal(next(keys), (d_model, 1), jnp.float32) * std
                   ).astype(jnp.bfloat16),
        "head_b": jnp.zeros((1, 1), jnp.float32),
        "layers": [],
    }
    for _ in range(n_layers):
        wq = jax.random.normal(next(keys), (d_model, d_model), jnp.float32) * std
        wk = jax.random.normal(next(keys), (d_model, d_model), jnp.float32) * std
        wv = jax.random.normal(next(keys), (d_model, d_model), jnp.float32) * std
        wo = jax.random.normal(next(keys), (d_model, d_model), jnp.float32) * std
        w1 = jax.random.normal(next(keys), (d_model, d_hidden), jnp.float32) * std
        w2 = jax.random.normal(next(keys), (d_model, d_hidden), jnp.float32) * std
        w3 = jax.random.normal(next(keys), (d_hidden, d_model), jnp.float32) * math.sqrt(1.0 / d_hidden)
        params["layers"].append({
            "rms1": jnp.ones((1, d_model), jnp.float32),
            "wqkv": jnp.concatenate([wq, wk, wv], axis=1).astype(jnp.bfloat16),  # (D, 3D)
            "wo": wo.astype(jnp.bfloat16),
            "rms2": jnp.ones((1, d_model), jnp.float32),
            "w13": jnp.concatenate([w1, w2], axis=1).astype(jnp.bfloat16),       # (D, 2Hd)
            "w3": w3.astype(jnp.bfloat16),
        })
    return params


if __name__ == "__main__":
    in_channels, d_model, n_heads, n_layers = 4, 128, 4, 2
    n_rows, n_cols, patch_size = 8, 8, 2      # 16 patches + cls -> L = 17 (padded to 128)
    B = 2

    key = jax.random.PRNGKey(0)
    kp, kx = jax.random.split(key)
    params = init_params(kp, in_channels, d_model, n_layers, n_cols, n_rows, patch_size)
    grid = jax.random.normal(kx, (B, in_channels, n_rows, n_cols), jnp.float32)

    out = jax.block_until_ready(vit_forward(grid, params, n_heads, patch_size))
    assert out.shape == (B,), out.shape

    ref = jax.block_until_ready(ref_forward(grid, params, n_heads, patch_size))
    if not jnp.allclose(out, ref, atol=3e-2, rtol=3e-2):
        raise RuntimeError(f"mismatch: pallas={out} ref={ref}")
    print("KERNEL_OK")
</pallas_src>

<mosaic_0001>
module attributes {stable_mosaic.version = 11 : i64} {
  func.func @patch_embed_kernel(%arg0: memref<256x128xbf16, #tpu.memory_space<vmem>>, %arg1: memref<128x128xbf16, #tpu.memory_space<vmem>>, %arg2: memref<256x128xf32, #tpu.memory_space<vmem>>, %arg3: memref<256x128xf32, #tpu.memory_space<vmem>>) attributes {dimension_semantics = [], scalar_prefetch = 0 : i64, scratch_operands = 0 : i64, tpu.core_type = #tpu.core_type<tc>} {
    %c0 = arith.constant 0 : index
    %c0_0 = arith.constant 0 : index
    %0 = vector.load %arg0[%c0, %c0_0] : memref<256x128xbf16, #tpu.memory_space<vmem>>, vector<256x128xbf16>
    %c0_1 = arith.constant 0 : index
    %c0_2 = arith.constant 0 : index
    %1 = vector.load %arg1[%c0_1, %c0_2] : memref<128x128xbf16, #tpu.memory_space<vmem>>, vector<128x128xbf16>
    %cst = arith.constant dense<0.000000e+00> : vector<256x128xf32>
    %2 = tpu.matmul %0, %1, %cst {dimension_numbers = #tpu.dot_dimension_numbers<[1], [0], [0], [1], [0, 0, 1, 1], [], []>} : vector<256x128xbf16>, vector<128x128xbf16>, vector<256x128xf32> -> vector<256x128xf32>
    %c0_3 = arith.constant 0 : index
    %c0_4 = arith.constant 0 : index
    %3 = vector.load %arg2[%c0_3, %c0_4] : memref<256x128xf32, #tpu.memory_space<vmem>>, vector<256x128xf32>
    %4 = arith.addf %2, %3 : vector<256x128xf32>
    %c0_5 = arith.constant 0 : index
    %c0_6 = arith.constant 0 : index
    %5 = vector.load %arg3[%c0_5, %c0_6] : memref<256x128xf32, #tpu.memory_space<vmem>>, vector<256x128xf32>
    tpu.vector_store %arg3[%c0_5, %c0_6], %4 {strides = array<i32>} : memref<256x128xf32, #tpu.memory_space<vmem>>, vector<256x128xf32>,
    return
  }
}

</mosaic_0001>

<llo_original>
// kernel: tpu_custom_call.1
$region0: #{tpu_custom_call.1}
  #allocation0 [shape = 'u32[]', space=smem, size = 0x4, offset = 0x4, fixed_abs, tag = 'smem constant byte address 0x4 - core index']
  #allocation1 [shape = 'u32[72,128]{1,0:T(1,128)}', space=vmem, size = 0x9000, scoped, tag = 'internal scratch']
  %s0 = inlined_call_operand.hbm [shape: bf16[256,128], index: 0, kind: input, shape index: {}]
  %s1 = inlined_call_operand.hbm [shape: bf16[128,128], index: 1, kind: input, shape index: {}]
  %s2 = inlined_call_operand.hbm [shape: f32[256,128], index: 2, kind: input, shape index: {}]
  %s3 = inlined_call_operand.hbm [shape: f32[256,128], index: 3, kind: output, shape index: {}]
  %s4 = sld [smem:[#allocation0]]
  $region34: #{tpu_custom_call.1} parent=0
    _
  %s6 = ssub.s32 1, %s4
  %s7 = scalar_select 0, %s6, %s4
  $region1: #{tpu_custom_call.1} parent=0
    #allocation2 [shape = 'u8[65536]{0}', space=vmem, size = 0x10000, scoped, tag = 'input window, operand 0, single buffered']
    #allocation3 [shape = 's32[1]{0}', space=sflag, size = 0x4, scoped, tag = 'scoped memory for tpu_custom_call.1']
    #allocation4 [shape = 's32[1]{0}', space=sflag, size = 0x4, scoped, tag = 'scoped memory for tpu_custom_call.1']
    #allocation5 [shape = 'u8[32768]{0}', space=vmem, size = 0x8000, scoped, tag = 'input window, operand 1, single buffered']
    #allocation6 [shape = 's32[1]{0}', space=sflag, size = 0x4, scoped, tag = 'scoped memory for tpu_custom_call.1']
    #allocation7 [shape = 'u8[131072]{0}', space=vmem, size = 0x20000, scoped, tag = 'input window, operand 2, single buffered']
    #allocation8 [shape = 'u8[131072]{0}', space=vmem, size = 0x20000, scoped, tag = 'output window, operand 0, single buffered']
    %8 = vsyncpa [#allocation3], 0
    %9 = vsyncpa [#allocation6], 0
    %10 = vsyncpa [#allocation4], 0
    // Predicated region
    $region2: #{tpu_custom_call.1} parent=1 // pred_check
      _
    $region3: #{tpu_custom_call.1} parent=1 // pred_check_branch
      %12 = sbr.rel (0) target = $region5
    $region4: #{tpu_custom_call.1} parent=1 // pred_region
      %14 = vsyncadd [#allocation3], 0
      %s15 = sshll.u32 %s0, 4
      %s16 = int_to_ptr.hbm [resolvable:$true] %s15
      %s17 = sshll.u32 [#allocation2], 4
      %s18 = int_to_ptr.vmem [resolvable:$true] %s17
      %23 = dma.hbm_to_vmem [thread:$0]  %s16, 2048, %s18, [#allocation3], 64, 64, 4
    $region5: #{tpu_custom_call.1} parent=1 // pred_fallthru
      _
    // Predicated region
    $region6: #{tpu_custom_call.1} parent=1 // pred_check
      _
    $region7: #{tpu_custom_call.1} parent=1 // pred_check_branch
      %25 = sbr.rel (0) target = $region9
    $region8: #{tpu_custom_call.1} parent=1 // pred_region
      %27 = vsyncadd [#allocation6], 0
      %s28 = sshll.u32 %s1, 4
      %s29 = int_to_ptr.hbm [resolvable:$true] %s28
      %s30 = sshll.u32 [#allocation5], 4
      %s31 = int_to_ptr.vmem [resolvable:$true] %s30
      %36 = dma.hbm_to_vmem [thread:$0]  %s29, 1024, %s31, [#allocation6], 64, 64, 4
    $region9: #{tpu_custom_call.1} parent=1 // pred_fallthru
      _
    // Predicated region
    $region10: #{tpu_custom_call.1} parent=1 // pred_check
      _
    $region11: #{tpu_custom_call.1} parent=1 // pred_check_branch
      %38 = sbr.rel (0) target = $region13
    $region12: #{tpu_custom_call.1} parent=1 // pred_region
      %40 = vsyncadd [#allocation6], 0
      %s41 = sshll.u32 %s2, 4
      %s42 = int_to_ptr.hbm [resolvable:$true] %s41
      %s43 = sshll.u32 [#allocation7], 4
      %s44 = int_to_ptr.vmem [resolvable:$true] %s43
      %49 = dma.hbm_to_vmem [thread:$0]  %s42, 4096, %s44, [#allocation6], 128, 128, 8
    $region13: #{tpu_custom_call.1} parent=1 // pred_fallthru
      _
    // Predicated region
    $region14: #{tpu_custom_call.1} parent=1 // pred_check
      _
    $region15: #{tpu_custom_call.1} parent=1 // pred_check_branch
      %51 = sbr.rel (0) target = $region17
    $region16: #{tpu_custom_call.1} parent=1 // pred_region
      %53 = dma.done [#allocation3], 2048
    $region17: #{tpu_custom_call.1} parent=1 // pred_fallthru
      _
    // Predicated region
    $region18: #{tpu_custom_call.1} parent=1 // pred_check
      _
    $region19: #{tpu_custom_call.1} parent=1 // pred_check_branch
      %55 = sbr.rel (0) target = $region21
    $region20: #{tpu_custom_call.1} parent=1 // pred_region
      %57 = dma.done [#allocation6], 1024
    $region21: #{tpu_custom_call.1} parent=1 // pred_fallthru
      _
    // Predicated region
    $region22: #{tpu_custom_call.1} parent=1 // pred_check
      _
    $region23: #{tpu_custom_call.1} parent=1 // pred_check_branch
      %59 = sbr.rel (0) target = $region25
    $region24: #{tpu_custom_call.1} parent=1 // pred_region
      %61 = dma.done [#allocation6], 4096
    $region25: #{tpu_custom_call.1} parent=1 // pred_fallthru
      _
    %v62 = vld [vmem:[#allocation2] sm:$0xf]
    %v63 = vld [vmem:[#allocation2 + $0x4] sm:$0xf]
    %v64 = vld [vmem:[#allocation2 + $0x8] sm:$0xf]
    %v65 = vld [vmem:[#allocation2 + $0xc] sm:$0xf]
    %v66 = vld [vmem:[#allocation2 + $0x10] sm:$0xf]
    %v67 = vld [vmem:[#allocation2 + $0x14] sm:$0xf]
    %v68 = vld [vmem:[#allocation2 + $0x18] sm:$0xf]
    %v69 = vld [vmem:[#allocation2 + $0x1c] sm:$0xf]
    %v70 = vld [vmem:[#allocation2 + $0x20] sm:$0xf]
    %v71 = vld [vmem:[#allocation2 + $0x24] sm:$0xf]
    %v72 = vld [vmem:[#allocation2 + $0x28] sm:$0xf]
    %v73 = vld [vmem:[#allocation2 + $0x2c] sm:$0xf]
    %v74 = vld [vmem:[#allocation2 + $0x30] sm:$0xf]
    %v75 = vld [vmem:[#allocation2 + $0x34] sm:$0xf]
    %v76 = vld [vmem:[#allocation2 + $0x38] sm:$0xf]
    %v77 = vld [vmem:[#allocation2 + $0x3c] sm:$0xf]
    %v78 = vld [vmem:[#allocation2 + $0x40] sm:$0xf]
    %v79 = vld [vmem:[#allocation2 + $0x44] sm:$0xf]
    %v80 = vld [vmem:[#allocation2 + $0x48] sm:$0xf]
    %v81 = vld [vmem:[#allocation2 + $0x4c] sm:$0xf]
    %v82 = vld [vmem:[#allocation2 + $0x50] sm:$0xf]
    %v83 = vld [vmem:[#allocation2 + $0x54] sm:$0xf]
    %v84 = vld [vmem:[#allocation2 + $0x58] sm:$0xf]
    %v85 = vld [vmem:[#allocation2 + $0x5c] sm:$0xf]
    %v86 = vld [vmem:[#allocation2 + $0x60] sm:$0xf]
    %v87 = vld [vmem:[#allocation2 + $0x64] sm:$0xf]
    %v88 = vld [vmem:[#allocation2 + $0x68] sm:$0xf]
    %v89 = vld [vmem:[#allocation2 + $0x6c] sm:$0xf]
    %v90 = vld [vmem:[#allocation2 + $0x70] sm:$0xf]
    %v91 = vld [vmem:[#allocation2 + $0x74] sm:$0xf]
    %v92 = vld [vmem:[#allocation2 + $0x78] sm:$0xf]
    %v93 = vld [vmem:[#allocation2 + $0x7c] sm:$0xf]
    %v94 = vld [vmem:[#allocation5] sm:$0xf]
    %v95 = vld [vmem:[#allocation5 + $0x4] sm:$0xf]
    %v96 = vld [vmem:[#allocation5 + $0x8] sm:$0xf]
    %v97 = vld [vmem:[#allocation5 + $0xc] sm:$0xf]
    %v98 = vld [vmem:[#allocation5 + $0x10] sm:$0xf]
    %v99 = vld [vmem:[#allocation5 + $0x14] sm:$0xf]
    %v100 = vld [vmem:[#allocation5 + $0x18] sm:$0xf]
    %v101 = vld [vmem:[#allocation5 + $0x1c] sm:$0xf]
    %v102 = vld [vmem:[#allocation5 + $0x20] sm:$0xf]
    %v103 = vld [vmem:[#allocation5 + $0x24] sm:$0xf]
    %v104 = vld [vmem:[#allocation5 + $0x28] sm:$0xf]
    %v105 = vld [vmem:[#allocation5 + $0x2c] sm:$0xf]
    %v106 = vld [vmem:[#allocation5 + $0x30] sm:$0xf]
    %v107 = vld [vmem:[#allocation5 + $0x34] sm:$0xf]
    %v108 = vld [vmem:[#allocation5 + $0x38] sm:$0xf]
    %v109 = vld [vmem:[#allocation5 + $0x3c] sm:$0xf]
    %v110 = vld [vmem:[#allocation7] sm:$0xff]
    %v111 = vld [vmem:[#allocation7 + $0x8] sm:$0xff]
    %v112 = vld [vmem:[#allocation7 + $0x10] sm:$0xff]
    %v113 = vld [vmem:[#allocation7 + $0x18] sm:$0xff]
    %v114 = vld [vmem:[#allocation7 + $0x20] sm:$0xff]
    %v115 = vld [vmem:[#allocation7 + $0x28] sm:$0xff]
    %v116 = vld [vmem:[#allocation7 + $0x30] sm:$0xff]
    %v117 = vld [vmem:[#allocation7 + $0x38] sm:$0xff]
    %v118 = vld [vmem:[#allocation7 + $0x40] sm:$0xff]
    %v119 = vld [vmem:[#allocation7 + $0x48] sm:$0xff]
    %v120 = vld [vmem:[#allocation7 + $0x50] sm:$0xff]
    %v121 = vld [vmem:[#allocation7 + $0x58] sm:$0xff]
    %v122 = vld [vmem:[#allocation7 + $0x60] sm:$0xff]
    %v123 = vld [vmem:[#allocation7 + $0x68] sm:$0xff]
    %v124 = vld [vmem:[#allocation7 + $0x70] sm:$0xff]
    %v125 = vld [vmem:[#allocation7 + $0x78] sm:$0xff]
    %v126 = vld [vmem:[#allocation7 + $0x80] sm:$0xff]
    %v127 = vld [vmem:[#allocation7 + $0x88] sm:$0xff]
    %v128 = vld [vmem:[#allocation7 + $0x90] sm:$0xff]
    %v129 = vld [vmem:[#allocation7 + $0x98] sm:$0xff]
    %v130 = vld [vmem:[#allocation7 + $0xa0] sm:$0xff]
    %v131 = vld [vmem:[#allocation7 + $0xa8] sm:$0xff]
    %v132 = vld [vmem:[#allocation7 + $0xb0] sm:$0xff]
    %v133 = vld [vmem:[#allocation7 + $0xb8] sm:$0xff]
    %v134 = vld [vmem:[#allocation7 + $0xc0] sm:$0xff]
    %v135 = vld [vmem:[#allocation7 + $0xc8] sm:$0xff]
    %v136 = vld [vmem:[#allocation7 + $0xd0] sm:$0xff]
    %v137 = vld [vmem:[#allocation7 + $0xd8] sm:$0xff]
    %v138 = vld [vmem:[#allocation7 + $0xe0] sm:$0xff]
    %v139 = vld [vmem:[#allocation7 + $0xe8] sm:$0xff]
    %v140 = vld [vmem:[#allocation7 + $0xf0] sm:$0xff]
    %v141 = vld [vmem:[#allocation7 + $0xf8] sm:$0xff]
    %v174 = vunpack.c.l.b16 %v62
    %v175 = vunpack.c.l.b16 %v63
    %v176 = vunpack.c.l.b16 %v64
    %v177 = vunpack.c.l.b16 %v65
    %v178 = vunpack.c.l.b16 %v66
    %v179 = vunpack.c.l.b16 %v67
    %v180 = vunpack.c.l.b16 %v68
    %v181 = vunpack.c.l.b16 %v69
    %v182 = vunpack.c.l.b16 %v70
    %v183 = vunpack.c.l.b16 %v71
    %v184 = vunpack.c.l.b16 %v72
    %v185 = vunpack.c.l.b16 %v73
    %v186 = vunpack.c.l.b16 %v74
    %v187 = vunpack.c.l.b16 %v75
    %v188 = vunpack.c.l.b16 %v76
    %v189 = vunpack.c.l.b16 %v77
    %v190 = vunpack.c.l.b16 %v78
    %v191 = vunpack.c.l.b16 %v79
    %v192 = vunpack.c.l.b16 %v80
    %v193 = vunpack.c.l.b16 %v81
    %v194 = vunpack.c.l.b16 %v82
    %v195 = vunpack.c.l.b16 %v83
    %v196 = vunpack.c.l.b16 %v84
    %v197 = vunpack.c.l.b16 %v85
    %v198 = vunpack.c.l.b16 %v86
    %v199 = vunpack.c.l.b16 %v87
    %v200 = vunpack.c.l.b16 %v88
    %v201 = vunpack.c.l.b16 %v89
    %v202 = vunpack.c.l.b16 %v90
    %v203 = vunpack.c.l.b16 %v91
    %v204 = vunpack.c.l.b16 %v92
    %v205 = vunpack.c.l.b16 %v93
    %v206 = vpack.c.b16 %v175, %v174
    %v207 = vpack.c.b16 %v177, %v176
    %v208 = vpack.c.b16 %v179, %v178
    %v209 = vpack.c.b16 %v181, %v180
    %v210 = vpack.c.b16 %v183, %v182
    %v211 = vpack.c.b16 %v185, %v184
    %v212 = vpack.c.b16 %v187, %v186
    %v213 = vpack.c.b16 %v189, %v188
    %v214 = vpack.c.b16 %v191, %v190
    %v215 = vpack.c.b16 %v193, %v192
    %v216 = vpack.c.b16 %v195, %v194
    %v217 = vpack.c.b16 %v197, %v196
    %v218 = vpack.c.b16 %v199, %v198
    %v219 = vpack.c.b16 %v201, %v200
    %v220 = vpack.c.b16 %v203, %v202
    %v221 = vpack.c.b16 %v205, %v204
    %v254 = vunpack.c.l.b16 %v94
    %v255 = vunpack.c.l.b16 %v95
    %v256 = vunpack.c.l.b16 %v96
    %v257 = vunpack.c.l.b16 %v97
    %v258 = vunpack.c.l.b16 %v98
    %v259 = vunpack.c.l.b16 %v99
    %v260 = vunpack.c.l.b16 %v100
    %v261 = vunpack.c.l.b16 %v101
    %v262 = vunpack.c.l.b16 %v102
    %v263 = vunpack.c.l.b16 %v103
    %v264 = vunpack.c.l.b16 %v104
    %v265 = vunpack.c.l.b16 %v105
    %v266 = vunpack.c.l.b16 %v106
    %v267 = vunpack.c.l.b16 %v107
    %v268 = vunpack.c.l.b16 %v108
    %v269 = vunpack.c.l.b16 %v109
    %v270 = vpack.c.b16 %v255, %v254
    %v271 = vpack.c.b16 %v257, %v256
    %v272 = vpack.c.b16 %v259, %v258
    %v273 = vpack.c.b16 %v261, %v260
    %v274 = vpack.c.b16 %v263, %v262
    %v275 = vpack.c.b16 %v265, %v264
    %v276 = vpack.c.b16 %v267, %v266
    %v277 = vpack.c.b16 %v269, %v268
    %286 = vmatpush.bf16.msra.mxu0 %v277
    %287 = vmatpush.bf16.msra.mxu0 %v276
    %288 = vmatpush.bf16.msra.mxu0 %v275
    %289 = vmatpush.bf16.msra.mxu0 %v274
    %290 = vmatpush.bf16.msra.mxu0 %v273
    %291 = vmatpush.bf16.msra.mxu0 %v272
    %292 = vmatpush.bf16.msra.mxu0 %v271
    %293 = vmatpush.bf16.msra.mxu0 %v270
    %294 = vmatmul.bf16.gmra.mxu0 %v206
    %v295 = vpop.f32.mrf.mxu0
    %v296 = vadd.f32 %v110, %v295
    %v297 = vpop.f32.mrf.mxu0
    %v298 = vadd.f32 %v111, %v297
    %299 = vmatmul.bf16.gmra.mxu0 %v207
    %v300 = vpop.f32.mrf.mxu0
    %v301 = vadd.f32 %v112, %v300
    %v302 = vpop.f32.mrf.mxu0
    %v303 = vadd.f32 %v113, %v302
    %304 = vmatmul.bf16.gmra.mxu0 %v208
    %v305 = vpop.f32.mrf.mxu0
    %v306 = vadd.f32 %v114, %v305
    %v307 = vpop.f32.mrf.mxu0
    %v308 = vadd.f32 %v115, %v307
    %309 = vmatmul.bf16.gmra.mxu0 %v209
    %v310 = vpop.f32.mrf.mxu0
    %v311 = vadd.f32 %v116, %v310
    %v312 = vpop.f32.mrf.mxu0
    %v313 = vadd.f32 %v117, %v312
    %314 = vmatmul.bf16.gmra.mxu0 %v210
    %v315 = vpop.f32.mrf.mxu0
    %v316 = vadd.f32 %v118, %v315
    %v317 = vpop.f32.mrf.mxu0
    %v318 = vadd.f32 %v119, %v317
    %319 = vmatmul.bf16.gmra.mxu0 %v211
    %v320 = vpop.f32.mrf.mxu0
    %v321 = vadd.f32 %v120, %v320
    %v322 = vpop.f32.mrf.mxu0
    %v323 = vadd.f32 %v121, %v322
    %324 = vmatmul.bf16.gmra.mxu0 %v212
    %v325 = vpop.f32.mrf.mxu0
    %v326 = vadd.f32 %v122, %v325
    %v327 = vpop.f32.mrf.mxu0
    %v328 = vadd.f32 %v123, %v327
    %329 = vmatmul.bf16.gmra.mxu0 %v213
    %v330 = vpop.f32.mrf.mxu0
    %v331 = vadd.f32 %v124, %v330
    %v332 = vpop.f32.mrf.mxu0
    %v333 = vadd.f32 %v125, %v332
    %334 = vmatmul.bf16.gmra.mxu0 %v214
    %v335 = vpop.f32.mrf.mxu0
    %v336 = vadd.f32 %v126, %v335
    %v337 = vpop.f32.mrf.mxu0
    %v338 = vadd.f32 %v127, %v337
    %339 = vmatmul.bf16.gmra.mxu0 %v215
    %v340 = vpop.f32.mrf.mxu0
    %v341 = vadd.f32 %v128, %v340
    %v342 = vpop.f32.mrf.mxu0
    %v343 = vadd.f32 %v129, %v342
    %344 = vmatmul.bf16.gmra.mxu0 %v216
    %v345 = vpop.f32.mrf.mxu0
    %v346 = vadd.f32 %v130, %v345
    %v347 = vpop.f32.mrf.mxu0
    %v348 = vadd.f32 %v131, %v347
    %349 = vmatmul.bf16.gmra.mxu0 %v217
    %v350 = vpop.f32.mrf.mxu0
    %v351 = vadd.f32 %v132, %v350
    %v352 = vpop.f32.mrf.mxu0
    %v353 = vadd.f32 %v133, %v352
    %354 = vmatmul.bf16.gmra.mxu0 %v218
    %v355 = vpop.f32.mrf.mxu0
    %v356 = vadd.f32 %v134, %v355
    %v357 = vpop.f32.mrf.mxu0
    %v358 = vadd.f32 %v135, %v357
    %359 = vmatmul.bf16.gmra.mxu0 %v219
    %v360 = vpop.f32.mrf.mxu0
    %v361 = vadd.f32 %v136, %v360
    %v362 = vpop.f32.mrf.mxu0
    %v363 = vadd.f32 %v137, %v362
    %364 = vmatmul.bf16.gmra.mxu0 %v220
    %v365 = vpop.f32.mrf.mxu0
    %v366 = vadd.f32 %v138, %v365
    %v367 = vpop.f32.mrf.mxu0
    %v368 = vadd.f32 %v139, %v367
    %369 = vmatmul.bf16.gmra.mxu0 %v221
    %v370 = vpop.f32.mrf.mxu0
    %v371 = vadd.f32 %v140, %v370
    %v372 = vpop.f32.mrf.mxu0
    %v373 = vadd.f32 %v141, %v372
    %374 = vdwg.mxu0
    %375 = vst [vmem:[#allocation8] sm:$0xff] %v296
    %376 = vst [vmem:[#allocation8 + $0x8] sm:$0xff] %v298
    %377 = vst [vmem:[#allocation8 + $0x10] sm:$0xff] %v301
    %378 = vst [vmem:[#allocation8 + $0x18] sm:$0xff] %v303
    %379 = vst [vmem:[#allocation8 + $0x20] sm:$0xff] %v306
    %380 = vst [vmem:[#allocation8 + $0x28] sm:$0xff] %v308
    %381 = vst [vmem:[#allocation8 + $0x30] sm:$0xff] %v311
    %382 = vst [vmem:[#allocation8 + $0x38] sm:$0xff] %v313
    %383 = vst [vmem:[#allocation8 + $0x40] sm:$0xff] %v316
    %384 = vst [vmem:[#allocation8 + $0x48] sm:$0xff] %v318
    %385 = vst [vmem:[#allocation8 + $0x50] sm:$0xff] %v321
    %386 = vst [vmem:[#allocation8 + $0x58] sm:$0xff] %v323
    %387 = vst [vmem:[#allocation8 + $0x60] sm:$0xff] %v326
    %388 = vst [vmem:[#allocation8 + $0x68] sm:$0xff] %v328
    %389 = vst [vmem:[#allocation8 + $0x70] sm:$0xff] %v331
    %390 = vst [vmem:[#allocation8 + $0x78] sm:$0xff] %v333
    %391 = vst [vmem:[#allocation8 + $0x80] sm:$0xff] %v336
    %392 = vst [vmem:[#allocation8 + $0x88] sm:$0xff] %v338
    %393 = vst [vmem:[#allocation8 + $0x90] sm:$0xff] %v341
    %394 = vst [vmem:[#allocation8 + $0x98] sm:$0xff] %v343
    %395 = vst [vmem:[#allocation8 + $0xa0] sm:$0xff] %v346
    %396 = vst [vmem:[#allocation8 + $0xa8] sm:$0xff] %v348
    %397 = vst [vmem:[#allocation8 + $0xb0] sm:$0xff] %v351
    %398 = vst [vmem:[#allocation8 + $0xb8] sm:$0xff] %v353
    %399 = vst [vmem:[#allocation8 + $0xc0] sm:$0xff] %v356
    %400 = vst [vmem:[#allocation8 + $0xc8] sm:$0xff] %v358
    %401 = vst [vmem:[#allocation8 + $0xd0] sm:$0xff] %v361
    %402 = vst [vmem:[#allocation8 + $0xd8] sm:$0xff] %v363
    %403 = vst [vmem:[#allocation8 + $0xe0] sm:$0xff] %v366
    %404 = vst [vmem:[#allocation8 + $0xe8] sm:$0xff] %v368
    %405 = vst [vmem:[#allocation8 + $0xf0] sm:$0xff] %v371
    %406 = vst [vmem:[#allocation8 + $0xf8] sm:$0xff] %v373
    // Predicated region
    $region26: #{tpu_custom_call.1} parent=1 // pred_check
      _
    $region27: #{tpu_custom_call.1} parent=1 // pred_check_branch
      %408 = sbr.rel (0) target = $region29
    $region28: #{tpu_custom_call.1} parent=1 // pred_region
      %410 = vsyncadd [#allocation4], 0
      %s411 = sshll.u32 [#allocation8], 4
      %s412 = int_to_ptr.vmem [resolvable:$true] %s411
      %s413 = sshll.u32 %s3, 4
      %s414 = int_to_ptr.hbm [resolvable:$true] %s413
      %419 = dma.vmem_to_hbm [thread:$0]  %s412, 4096, %s414, [#allocation4], 128, 128, 8
    $region29: #{tpu_custom_call.1} parent=1 // pred_fallthru
      _
    // Predicated region
    $region30: #{tpu_custom_call.1} parent=1 // pred_check
      _
    $region31: #{tpu_custom_call.1} parent=1 // pred_check_branch
      %421 = sbr.rel (0) target = $region33
    $region32: #{tpu_custom_call.1} parent=1 // pred_region
      %423 = dma.done [#allocation4], 4096
    $region33: #{tpu_custom_call.1} parent=1 // pred_fallthru
      _
    %424 = vsyncpa [#allocation3], 1
    %425 = vsyncpa [#allocation6], 1
    %426 = vsyncpa [#allocation4], 1

</llo_original>
